<compile_context>
chip_gen: v5e
topology: v5e:2x2
jax: 0.10.0
libtpu: 0.0.40
codegen_flags: <defaults>
</compile_context>

<pallas_src>
import math

import jax
import jax.numpy as jnp
from jax.experimental import pallas as pl
from jax.experimental.pallas import tpu as pltpu

MIN_VAL = 0.0
MAX_VAL = 6.0

K_IN = 16                 # Linear in_features
N_OUT = 32                # Linear out_features
PACK = 128 // K_IN        # batch rows packed per 128-lane slab row (= 8)
KB = K_IN * PACK          # 128  (slab input width)
NB = N_OUT * PACK         # 256  (slab output width, lane-dense)


def _linear_clamp_kernel(x_ref, w_ref, b_ref, o_ref):
    # x_ref: (tile_slab, 128)  packed input slab tile (streamed, double-buffered)
    # w_ref: (128, 256)        block-diagonal weight  (resident in VMEM across the grid)
    # b_ref: (1, 256)          bias tiled 8x          (resident in VMEM across the grid)
    # o_ref: (tile_slab, 256)  packed, lane-dense output slab tile
    y = jnp.dot(x_ref[...], w_ref[...], preferred_element_type=jnp.float32)
    y = y + b_ref[...]
    y = jnp.maximum(y, MIN_VAL)   # clamp_min
    y = jnp.minimum(y, MAX_VAL)   # clamp_max
    # TODO(synk): optionally emit bf16 here (and in out_shape) to halve output HBM traffic;
    # kept f32 to preserve the module's exact output dtype/semantics.
    o_ref[...] = y.astype(o_ref.dtype)


def prepare_params(w, b):
    """Build the block-diagonal weight / tiled bias ONCE per set of Linear weights.

    w: (16, 32), b: (32,)  ->  w_big: (128, 256), b_big: (1, 256)
      w_big[j*16 + f, j*32 + n] = w[f, n]   (zero off the block diagonal)
    """
    assert w.shape == (K_IN, N_OUT) and b.shape == (N_OUT,)
    eye = jnp.eye(PACK, dtype=w.dtype)
    w_big = jnp.einsum("jk,fn->jfkn", eye, w).reshape(KB, NB)
    b_big = jnp.tile(b, PACK).reshape(1, NB)
    return w_big, b_big


def _round_up(v, m):
    return ((v + m - 1) // m) * m


def _choose_tile_slab(slab_rows, max_tile_slab):
    """Pick a sublane-aligned slab tile; split large work into >=2 balanced tiles (v7x megacore)."""
    padded = _round_up(max(slab_rows, 1), 8)
    n_tiles = pl.cdiv(padded, max_tile_slab)
    if padded >= 2048:                       # >= ~16K batch rows: keep both v7x TCs busy
        n_tiles = max(n_tiles, 2)
    return max(_round_up(pl.cdiv(padded, n_tiles), 8), 8)


def linear_clamp_prepared(x, w_big, b_big, *, max_tile_slab=8192):
    """y = clip(x @ w + b, 0, 6) with pre-built block-diagonal params."""
    B, K = x.shape
    assert K == K_IN
    assert w_big.shape == (KB, NB) and b_big.shape == (1, NB)

    # Pad only to the pack factor (8 rows). No-op (no copy) when B % 8 == 0 — the common case.
    b_pad = _round_up(B, PACK)
    if b_pad != B:
        x = jnp.pad(x, ((0, b_pad - B), (0, 0)))
    slab_rows = b_pad // PACK
    x_slab = x.reshape(slab_rows, KB)        # free, contiguous reshape to the lane-dense slab

    tile_slab = _choose_tile_slab(slab_rows, max_tile_slab)
    grid = (pl.cdiv(slab_rows, tile_slab),)  # last tile may be partial: OOB stores are masked

    # Explicit VMEM budget: double-buffered input+output tiles + resident weight/bias + margin.
    in_tile_bytes = tile_slab * KB * 4
    out_tile_bytes = tile_slab * NB * 4
    vmem_limit = max(2 * (in_tile_bytes + out_tile_bytes) + KB * NB * 4 + NB * 4 + (2 << 20),
                     32 << 20)

    cost = pl.CostEstimate(
        flops=2 * slab_rows * KB * NB,
        transcendentals=0,
        bytes_accessed=slab_rows * (KB + NB) * 4 + KB * NB * 4 + NB * 4,
    )

    out_slab = pl.pallas_call(
        _linear_clamp_kernel,
        out_shape=jax.ShapeDtypeStruct((slab_rows, NB), x.dtype),
        grid_spec=pl.GridSpec(
            grid=grid,
            in_specs=[
                pl.BlockSpec((tile_slab, KB), lambda i: (i, 0)),   # streamed batch tiles
                pl.BlockSpec((KB, NB), lambda i: (0, 0)),          # weight: resident in VMEM
                pl.BlockSpec((1, NB), lambda i: (0, 0)),           # bias:   resident in VMEM
            ],
            out_specs=pl.BlockSpec((tile_slab, NB), lambda i: (i, 0)),
        ),
        compiler_params=pltpu.CompilerParams(
            dimension_semantics=("parallel",),                     # shard batch tiles across TCs
            vmem_limit_bytes=int(vmem_limit),
        ),
        cost_estimate=cost,
    )(x_slab, w_big, b_big)

    # Free, contiguous reshape back to (b_pad, 32); slice only in the (rare) ragged case.
    out = out_slab.reshape(b_pad, N_OUT)
    if b_pad != B:
        out = out[:B]
    return out


def linear_clamp(x, w, b, *, max_tile_slab=8192):
    """Convenience wrapper: builds block-diagonal params then calls the prepared path."""
    w_big, b_big = prepare_params(w, b)
    return linear_clamp_prepared(x, w_big, b_big, max_tile_slab=max_tile_slab)


if __name__ == "__main__":
    key = jax.random.PRNGKey(0)
    k_x, k_w, k_b = jax.random.split(key, 3)

    B, IN, OUT = 2, 16, 32

    # Deterministic parameter init (matches nn.Linear(16, 32) shapes).
    bound = 1.0 / math.sqrt(IN)
    w = jax.random.uniform(k_w, (IN, OUT), jnp.float32, -bound, bound)
    b = jax.random.uniform(k_b, (OUT,), jnp.float32, -bound, bound)
    x = jax.random.normal(k_x, (B, IN), jnp.float32)

    # Hoist block-diagonal weight construction out of the per-call path (done once per weights).
    w_big, b_big = prepare_params(w, b)
    run = jax.jit(linear_clamp_prepared, static_argnames=("max_tile_slab",))

    # Native-shape check (B=2 -> one partial slab row; pad/slice path is tiny and exercised once).
    out = jax.block_until_ready(run(x, w_big, b_big))
    ref = jnp.clip(x @ w + b, MIN_VAL, MAX_VAL)
    assert out.shape == (B, OUT)
    assert jnp.allclose(out, ref, atol=1e-4, rtol=1e-4)

    # Multi-tile path: B % 8 == 0 (no pad, no slice), partial last grid tile.
    x_big = jax.random.normal(k_x, (1000, IN), jnp.float32)
    out_big = jax.block_until_ready(run(x_big, w_big, b_big, max_tile_slab=32))
    ref_big = jnp.clip(x_big @ w + b, MIN_VAL, MAX_VAL)
    assert out_big.shape == (1000, OUT)
    assert jnp.allclose(out_big, ref_big, atol=1e-4, rtol=1e-4)

    # Ragged batch path: B % 8 != 0 (minimal 8-row pad + trailing slice), partial last grid tile.
    x_rag = jax.random.normal(k_x, (1003, IN), jnp.float32)
    out_rag = jax.block_until_ready(run(x_rag, w_big, b_big, max_tile_slab=32))
    ref_rag = jnp.clip(x_rag @ w + b, MIN_VAL, MAX_VAL)
    assert out_rag.shape == (1003, OUT)
    assert jnp.allclose(out_rag, ref_rag, atol=1e-4, rtol=1e-4)

    print("KERNEL_OK")
</pallas_src>

<mosaic_0001>
module attributes {stable_mosaic.version = 11 : i64} {
  func.func @_linear_clamp_kernel(%arg0: i32, %arg1: memref<8x128xf32, #tpu.memory_space<vmem>>, %arg2: memref<128x256xf32, #tpu.memory_space<vmem>>, %arg3: memref<1x256xf32, #tpu.memory_space<vmem>>, %arg4: memref<8x256xf32, #tpu.memory_space<vmem>>) attributes {dimension_semantics = [#tpu.dimension_semantics<parallel>], iteration_bounds = array<i64: 1>, scalar_prefetch = 0 : i64, scratch_operands = 0 : i64, tpu.core_type = #tpu.core_type<tc>, window_params = [{transform_indices = @transform_0, window_bounds = array<i64: 8, 128>}, {pipeline_mode = #tpu.pipeline_mode<synchronous>, transform_indices = @transform_1, window_bounds = array<i64: 128, 256>}, {pipeline_mode = #tpu.pipeline_mode<synchronous>, transform_indices = @transform_2, window_bounds = array<i64: 1, 256>}, {transform_indices = @transform_3, window_bounds = array<i64: 8, 256>}]} {
    %c0 = arith.constant 0 : index
    %c0_0 = arith.constant 0 : index
    %0 = vector.load %arg1[%c0, %c0_0] : memref<8x128xf32, #tpu.memory_space<vmem>>, vector<8x128xf32>
    %c0_1 = arith.constant 0 : index
    %c0_2 = arith.constant 0 : index
    %1 = vector.load %arg2[%c0_1, %c0_2] : memref<128x256xf32, #tpu.memory_space<vmem>>, vector<128x256xf32>
    %cst = arith.constant dense<0.000000e+00> : vector<8x256xf32>
    %2 = tpu.matmul %0, %1, %cst {dimension_numbers = #tpu.dot_dimension_numbers<[1], [0], [0], [1], [0, 0, 1, 1], [], []>} : vector<8x128xf32>, vector<128x256xf32>, vector<8x256xf32> -> vector<8x256xf32>
    %c0_3 = arith.constant 0 : index
    %c0_4 = arith.constant 0 : index
    %3 = vector.load %arg3[%c0_3, %c0_4] : memref<1x256xf32, #tpu.memory_space<vmem>>, vector<1x256xf32>
    %4 = vector.broadcast %3 : vector<1x256xf32> to vector<8x256xf32>
    %5 = arith.addf %2, %4 : vector<8x256xf32>
    %cst_5 = arith.constant 0.000000e+00 : f32
    %6 = vector.broadcast %cst_5 : f32 to vector<8x256xf32>
    %7 = arith.maximumf %5, %6 : vector<8x256xf32>
    %cst_6 = arith.constant 6.000000e+00 : f32
    %8 = vector.broadcast %cst_6 : f32 to vector<8x256xf32>
    %9 = arith.minimumf %7, %8 : vector<8x256xf32>
    %c0_7 = arith.constant 0 : index
    %c0_8 = arith.constant 0 : index
    %10 = vector.load %arg4[%c0_7, %c0_8] : memref<8x256xf32, #tpu.memory_space<vmem>>, vector<8x256xf32>
    tpu.vector_store %arg4[%c0_7, %c0_8], %9 {strides = array<i32>} : memref<8x256xf32, #tpu.memory_space<vmem>>, vector<8x256xf32>,
    return
  }
  func.func @transform_0(%arg0: i32) -> (i32, i32) {
    %c0_i32 = arith.constant 0 : i32
    %c0_i32_0 = arith.constant 0 : i32
    return %arg0, %c0_i32 : i32, i32
  }
  func.func @transform_1(%arg0: i32) -> (i32, i32) {
    %c0_i32 = arith.constant 0 : i32
    %c0_i32_0 = arith.constant 0 : i32
    %c0_i32_1 = arith.constant 0 : i32
    return %c0_i32, %c0_i32_0 : i32, i32
  }
  func.func @transform_2(%arg0: i32) -> (i32, i32) {
    %c0_i32 = arith.constant 0 : i32
    %c0_i32_0 = arith.constant 0 : i32
    %c0_i32_1 = arith.constant 0 : i32
    return %c0_i32, %c0_i32_0 : i32, i32
  }
  func.func @transform_3(%arg0: i32) -> (i32, i32) {
    %c0_i32 = arith.constant 0 : i32
    %c0_i32_0 = arith.constant 0 : i32
    return %arg0, %c0_i32 : i32, i32
  }
}

</mosaic_0001>

<llo_original>
// kernel: linear_clamp_prepared.1
$region0: #{linear_clamp_prepared.1}
  #allocation0 [shape = 'u32[]', space=smem, size = 0x4, offset = 0x4, fixed_abs, tag = 'smem constant byte address 0x4 - core index']
  #allocation1 [shape = 'u32[72,128]{1,0:T(1,128)}', space=vmem, size = 0x9000, scoped, tag = 'internal scratch']
  %s0 = inlined_call_operand.vmem [shape: f32[1,128], index: 0, kind: input, shape index: {}]
  %s1 = inlined_call_operand.hbm [shape: f32[128,256], index: 1, kind: input, shape index: {}]
  %s2 = inlined_call_operand.vmem [shape: f32[1,256], index: 2, kind: input, shape index: {}]
  %s3 = inlined_call_operand.vmem [shape: f32[1,256], index: 3, kind: output, shape index: {}]
  %s4 = sld [smem:[#allocation0]]
  $region56: #{linear_clamp_prepared.1} parent=0
    _
  %s6 = ssub.s32 1, %s4
  %s7 = scalar_select 0, %s6, %s4
  $region1: #{linear_clamp_prepared.1} parent=0
    #allocation2 [shape = 'u8[131072]{0}', space=vmem, size = 0x20000, scoped, tag = 'input window, operand 1, single buffered']
    #allocation3 [shape = 's32[1]{0}', space=sflag, size = 0x4, scoped, tag = 'scoped memory for linear_clamp_prepared.1']
    #allocation4 [shape = 'u8[8192]{0}', space=vmem, size = 0x2000, scoped, tag = 'output window, operand 0, single buffered']
    %8 = vsyncpa [#allocation3], 0
    // Predicated region
    $region2: #{linear_clamp_prepared.1} parent=1 // pred_check
      _
    $region3: #{linear_clamp_prepared.1} parent=1 // pred_check_branch
      %10 = sbr.rel (0) target = $region5
    $region4: #{linear_clamp_prepared.1} parent=1 // pred_region
      _
    $region5: #{linear_clamp_prepared.1} parent=1 // pred_fallthru
      _
    // Predicated region
    $region6: #{linear_clamp_prepared.1} parent=1 // pred_check
      _
    $region7: #{linear_clamp_prepared.1} parent=1 // pred_check_branch
      %12 = sbr.rel (0) target = $region9
    $region8: #{linear_clamp_prepared.1} parent=1 // pred_region
      %14 = vsyncadd [#allocation3], 0
      %s15 = sshll.u32 %s1, 4
      %s16 = int_to_ptr.hbm [resolvable:$true] %s15
      %s17 = sshll.u32 [#allocation2], 4
      %s18 = int_to_ptr.vmem [resolvable:$true] %s17
      %23 = dma.hbm_to_vmem [thread:$0]  %s16, 4096, %s18, [#allocation3], 256, 256, 16
    $region9: #{linear_clamp_prepared.1} parent=1 // pred_fallthru
      _
    // Predicated region
    $region10: #{linear_clamp_prepared.1} parent=1 // pred_check
      _
    $region11: #{linear_clamp_prepared.1} parent=1 // pred_check_branch
      %25 = sbr.rel (0) target = $region13
    $region12: #{linear_clamp_prepared.1} parent=1 // pred_region
      _
    $region13: #{linear_clamp_prepared.1} parent=1 // pred_fallthru
      _
    // Predicated region
    $region14: #{linear_clamp_prepared.1} parent=1 // pred_check
      _
    $region15: #{linear_clamp_prepared.1} parent=1 // pred_check_branch
      %27 = sbr.rel (0) target = $region17
    $region16: #{linear_clamp_prepared.1} parent=1 // pred_region
      %29 = dma.done [#allocation3], 4096
    $region17: #{linear_clamp_prepared.1} parent=1 // pred_fallthru
      _
    %v30 = vld [vmem:[%s0] sm:$0xff]
    %v31 = vld [vmem:[#allocation2] sm:$0xff]
    %v32 = vld [vmem:[#allocation2 + $0x8] sm:$0xff]
    %v33 = vld [vmem:[#allocation2 + $0x10] sm:$0xff]
    %v34 = vld [vmem:[#allocation2 + $0x18] sm:$0xff]
    %v35 = vld [vmem:[#allocation2 + $0x20] sm:$0xff]
    %v36 = vld [vmem:[#allocation2 + $0x28] sm:$0xff]
    %v37 = vld [vmem:[#allocation2 + $0x30] sm:$0xff]
    %v38 = vld [vmem:[#allocation2 + $0x38] sm:$0xff]
    %v39 = vld [vmem:[#allocation2 + $0x40] sm:$0xff]
    %v40 = vld [vmem:[#allocation2 + $0x48] sm:$0xff]
    %v41 = vld [vmem:[#allocation2 + $0x50] sm:$0xff]
    %v42 = vld [vmem:[#allocation2 + $0x58] sm:$0xff]
    %v43 = vld [vmem:[#allocation2 + $0x60] sm:$0xff]
    %v44 = vld [vmem:[#allocation2 + $0x68] sm:$0xff]
    %v45 = vld [vmem:[#allocation2 + $0x70] sm:$0xff]
    %v46 = vld [vmem:[#allocation2 + $0x78] sm:$0xff]
    %v47 = vld [vmem:[#allocation2 + $0x80] sm:$0xff]
    %v48 = vld [vmem:[#allocation2 + $0x88] sm:$0xff]
    %v49 = vld [vmem:[#allocation2 + $0x90] sm:$0xff]
    %v50 = vld [vmem:[#allocation2 + $0x98] sm:$0xff]
    %v51 = vld [vmem:[#allocation2 + $0xa0] sm:$0xff]
    %v52 = vld [vmem:[#allocation2 + $0xa8] sm:$0xff]
    %v53 = vld [vmem:[#allocation2 + $0xb0] sm:$0xff]
    %v54 = vld [vmem:[#allocation2 + $0xb8] sm:$0xff]
    %v55 = vld [vmem:[#allocation2 + $0xc0] sm:$0xff]
    %v56 = vld [vmem:[#allocation2 + $0xc8] sm:$0xff]
    %v57 = vld [vmem:[#allocation2 + $0xd0] sm:$0xff]
    %v58 = vld [vmem:[#allocation2 + $0xd8] sm:$0xff]
    %v59 = vld [vmem:[#allocation2 + $0xe0] sm:$0xff]
    %v60 = vld [vmem:[#allocation2 + $0xe8] sm:$0xff]
    %v61 = vld [vmem:[#allocation2 + $0xf0] sm:$0xff]
    %v62 = vld [vmem:[#allocation2 + $0xf8] sm:$0xff]
    %v63 = vld [vmem:[%s2] sm:$0x3]
    %v65 = vperm.slane %v63, 0
    %v66 = vperm.slane %v63, 1
    %69 = vmatpush.msra.mxu0 %v61
    %70 = vmatpush.msra.mxu0 %v59
    %71 = vmatpush.msra.mxu0 %v57
    %72 = vmatpush.msra.mxu0 %v55
    %73 = vmatpush.msra.mxu0 %v53
    %74 = vmatpush.msra.mxu0 %v51
    %75 = vmatpush.msra.mxu0 %v49
    %76 = vmatpush.msra.mxu0 %v47
    %77 = vmatpush.msra.mxu0 %v45
    %78 = vmatpush.msra.mxu0 %v43
    %79 = vmatpush.msra.mxu0 %v41
    %80 = vmatpush.msra.mxu0 %v39
    %81 = vmatpush.msra.mxu0 %v37
    %82 = vmatpush.msra.mxu0 %v35
    %83 = vmatpush.msra.mxu0 %v33
    %84 = vmatpush.msra.mxu0 %v31
    %85 = vmatmul.f32.gmra.mxu0 %v30
    %v86 = vpop.f32.mrf.mxu0
    %v87 = vadd.f32 %v65, %v86
    %88 = vdwg.mxu0
    %89 = vmatpush.msra.mxu0 %v62
    %90 = vmatpush.msra.mxu0 %v60
    %91 = vmatpush.msra.mxu0 %v58
    %92 = vmatpush.msra.mxu0 %v56
    %93 = vmatpush.msra.mxu0 %v54
    %94 = vmatpush.msra.mxu0 %v52
    %95 = vmatpush.msra.mxu0 %v50
    %96 = vmatpush.msra.mxu0 %v48
    %97 = vmatpush.msra.mxu0 %v46
    %98 = vmatpush.msra.mxu0 %v44
    %99 = vmatpush.msra.mxu0 %v42
    %100 = vmatpush.msra.mxu0 %v40
    %101 = vmatpush.msra.mxu0 %v38
    %102 = vmatpush.msra.mxu0 %v36
    %103 = vmatpush.msra.mxu0 %v34
    %104 = vmatpush.msra.mxu0 %v32
    %105 = vmatmul.f32.gmra.mxu0 %v30
    %v106 = vpop.f32.mrf.mxu0
    %v107 = vadd.f32 %v66, %v106
    %108 = vdwg.mxu0
    %v109 = vmax.f32 %v87, 0.0
    %v110 = vmax.f32 %v107, 0.0
    %v111 = vmin.f32 %v109, 6.0
    %v112 = vmin.f32 %v110, 6.0
    %v115 = vrot.slane %v112, 7
    %vm116 = vcmask 1040384
    %v117 = vsel %vm116, %v111, %v115
    %vm118 = vcmask 1041409
    %v119 = vsel %vm118, %v111, %v115
    %v120 = vrot.slane %v119, 1
    %vm121 = vcmask 1042434
    %v122 = vsel %vm121, %v111, %v115
    %v123 = vrot.slane %v122, 2
    %vm124 = vcmask 1043459
    %v125 = vsel %vm124, %v111, %v115
    %v126 = vrot.slane %v125, 3
    %vm127 = vcmask 1044484
    %v128 = vsel %vm127, %v111, %v115
    %v129 = vrot.slane %v128, 4
    %vm130 = vcmask 1045509
    %v131 = vsel %vm130, %v111, %v115
    %v132 = vrot.slane %v131, 5
    %vm133 = vcmask 1046534
    %v134 = vsel %vm133, %v111, %v115
    %v135 = vrot.slane %v134, 6
    %vm136 = vcmask 1046528
    %v137 = vsel %vm136, %v115, %v111
    %v138 = vrot.slane %v137, 7
    %v147 = vlaneseq
    %vm148 = vcmp.ge.s32.totalorder %v147, 0
    %vm149 = vcmp.lt.s32.totalorder %v147, 256
    %vm150 = vmand %vm148, %vm149
    %151 = vst.msk [vmem:[#allocation4] sm:$0x3] %vm150, %v117
    %152 = vst.msk [vmem:[#allocation4 + $0x2] sm:$0x3] %vm150, %v120
    %153 = vst.msk [vmem:[#allocation4 + $0x4] sm:$0x3] %vm150, %v123
    %154 = vst.msk [vmem:[#allocation4 + $0x6] sm:$0x3] %vm150, %v126
    %155 = vst.msk [vmem:[#allocation4 + $0x8] sm:$0x3] %vm150, %v129
    %156 = vst.msk [vmem:[#allocation4 + $0xa] sm:$0x3] %vm150, %v132
    %157 = vst.msk [vmem:[#allocation4 + $0xc] sm:$0x3] %vm150, %v135
    %158 = vst.msk [vmem:[#allocation4 + $0xe] sm:$0x3] %vm150, %v138
    // Predicated region
    $region18: #{linear_clamp_prepared.1} parent=1 // pred_check
      _
    $region19: #{linear_clamp_prepared.1} parent=1 // pred_check_branch
      %160 = sbr.rel (0) target = $region21
    $region20: #{linear_clamp_prepared.1} parent=1 // pred_region
      // Predicated region
      $region22: #{linear_clamp_prepared.1} parent=20 // pred_check
        _
      $region23: #{linear_clamp_prepared.1} parent=20 // pred_check_branch
        %162 = sbr.rel (0) target = $region25
      $region24: #{linear_clamp_prepared.1} parent=20 // pred_region
        // Predicated region
        $region26: #{linear_clamp_prepared.1} parent=24 // pred_check
          _
        $region27: #{linear_clamp_prepared.1} parent=24 // pred_check_branch
          %164 = sbr.rel target = $region29
        $region28: #{linear_clamp_prepared.1} parent=24 // pred_region
          // Predicated region
          $region41: #{linear_clamp_prepared.1} parent=28 // pred_check
            _
          $region42: #{linear_clamp_prepared.1} parent=28 // pred_check_branch
            %180 = sbr.rel (0) target = $region44
          $region43: #{linear_clamp_prepared.1} parent=28 // pred_region
            %s182 = ssub.s32 4, 1
            loop: start=0, step=1, limit=1
            $region45: #{linear_clamp_prepared.1} parent=43 // loop_pre_header
              _
            $region46: #{linear_clamp_prepared.1} parent=43 // loop_header
              %s184 = sphi 0, %s188
              %p185 = scmp.ge.s32.totalorder %s184, 1
              %s189 = sphi [#allocation4], [#allocation4]
              %s190 = sphi %s3, %s3
            $region47: #{linear_clamp_prepared.1} parent=43 // loop_header_branch
              %187 = sbr.rel (%p185) target = $region51
            $region48: #{linear_clamp_prepared.1} parent=43 // loop_body
              %v191 = vld [vmem:[%s189] sm:%s182]
              %192 = vst [vmem:[%s190] sm:%s182] %v191
            $region49: #{linear_clamp_prepared.1} parent=43 // loop_footer
              %s188 = sadd.s32 1, %s184
            $region50: #{linear_clamp_prepared.1} parent=43 // loop_footer_branch
              %183 = sbr.rel target = $region46
            $region51: #{linear_clamp_prepared.1} parent=43 // loop_exit
              _
          $region44: #{linear_clamp_prepared.1} parent=28 // pred_fallthru
            _
        $region29: #{linear_clamp_prepared.1} parent=24 // pred_fallthru
          _
        // Predicated region
        $region30: #{linear_clamp_prepared.1} parent=24 // pred_check
          _
        $region31: #{linear_clamp_prepared.1} parent=24 // pred_check_branch
          %166 = sbr.rel (0) target = $region33
        $region32: #{linear_clamp_prepared.1} parent=24 // pred_region
          %s168 = ssub.s32 4, 1
          loop: start=0, step=1, limit=1
          $region34: #{linear_clamp_prepared.1} parent=32 // loop_pre_header
            _
          $region35: #{linear_clamp_prepared.1} parent=32 // loop_header
            %s170 = sphi 0, %s174
            %p171 = scmp.ge.s32.totalorder %s170, 1
            %s175 = sphi [#allocation4], [#allocation4]
            %s176 = sphi %s3, %s3
          $region36: #{linear_clamp_prepared.1} parent=32 // loop_header_branch
            %173 = sbr.rel (%p171) target = $region40
          $region37: #{linear_clamp_prepared.1} parent=32 // loop_body
            %v177 = vld [vmem:[%s175] sm:%s168]
            %178 = vst [vmem:[%s176] sm:%s168] %v177
          $region38: #{linear_clamp_prepared.1} parent=32 // loop_footer
            %s174 = sadd.s32 1, %s170
          $region39: #{linear_clamp_prepared.1} parent=32 // loop_footer_branch
            %169 = sbr.rel target = $region35
          $region40: #{linear_clamp_prepared.1} parent=32 // loop_exit
            _
        $region33: #{linear_clamp_prepared.1} parent=24 // pred_fallthru
          _
      $region25: #{linear_clamp_prepared.1} parent=20 // pred_fallthru
        _
      %193 = vnop
    $region21: #{linear_clamp_prepared.1} parent=1 // pred_fallthru
      _
    // Predicated region
    $region52: #{linear_clamp_prepared.1} parent=1 // pred_check
      _
    $region53: #{linear_clamp_prepared.1} parent=1 // pred_check_branch
      %195 = sbr.rel (0) target = $region55
    $region54: #{linear_clamp_prepared.1} parent=1 // pred_region
      _
    $region55: #{linear_clamp_prepared.1} parent=1 // pred_fallthru
      _
    %196 = vsyncpa [#allocation3], 1

</llo_original>
